<compile_context>
chip_gen: v6e
topology: v6e:2x2x1
jax: 0.10.0
libtpu: 0.0.40
codegen_flags: <defaults>
</compile_context>

<pallas_src>
import functools

import jax
import jax.numpy as jnp
from jax.experimental import pallas as pl
from jax.experimental.pallas import tpu as pltpu


def _fused_embed_kernel(xs_ref, xa_ref, ws_ref, wa_ref, bs_ref, ba_ref, out_ref,
                        *, compute_dtype):
    """xs:(Bt,S), xa:(Bt,A), ws:(S,H), wa:(A,H), bs/ba:(1,H) -> out:(Bt,H).

    Two MXU matmuls with f32 accumulation; bias/tanh/add epilogue in
    `compute_dtype` (bf16 on v6e/v7x, f32 on v5e), halves computed separately to
    keep peak live intermediates small.
    """
    xs = xs_ref[...].astype(jnp.bfloat16)
    xa = xa_ref[...].astype(jnp.bfloat16)
    ws = ws_ref[...].astype(jnp.bfloat16)
    wa = wa_ref[...].astype(jnp.bfloat16)

    rs = jnp.dot(xs, ws, preferred_element_type=jnp.float32)   # (Bt, H) f32 acc
    ra = jnp.dot(xa, wa, preferred_element_type=jnp.float32)   # (Bt, H) f32 acc

    ts = jnp.tanh(rs.astype(compute_dtype) + bs_ref[...].astype(compute_dtype))
    ta = jnp.tanh(ra.astype(compute_dtype) + ba_ref[...].astype(compute_dtype))
    out_ref[...] = (ts + ta).astype(out_ref.dtype)


def prepare_params(ws, bs, wa, ba):
    """Pre-cast weights to bf16 once, outside the hot path. Biases stay f32."""
    return (ws.astype(jnp.bfloat16), bs.astype(jnp.float32),
            wa.astype(jnp.bfloat16), ba.astype(jnp.float32))


def _default_compute_dtype():
    """bf16 epilogue on v6e/v7x (bf16 EUP/VPU); f32 on v5e (no bf16 vector units)."""
    try:
        kind = jax.devices()[0].device_kind.lower()
    except Exception:
        return jnp.float32
    return jnp.float32 if "v5" in kind else jnp.bfloat16


def deep_map_learner_complex_forward(state, action, ws, bs, wa, ba, *,
                                     batch_tile=2048,
                                     out_dtype=jnp.float32,
                                     compute_dtype=None):
    """state: (B, state_dim), action: (B, action_dim) -> (B, embed_dim).

    For hot-path use, pre-cast weights once with prepare_params() and reuse them.
    """
    b, s = state.shape
    a = action.shape[1]
    h = ws.shape[1]
    if compute_dtype is None:
        compute_dtype = _default_compute_dtype()

    kernel = functools.partial(_fused_embed_kernel, compute_dtype=compute_dtype)

    out_bytes = jnp.dtype(out_dtype).itemsize
    cost = pl.CostEstimate(
        flops=2 * b * (s + a) * h,
        transcendentals=2 * b * h,
        bytes_accessed=(b * s * 4 + b * a * 4
                        + (s + a) * h * ws.dtype.itemsize + 2 * h * 4
                        + b * h * out_bytes),
    )

    if b <= batch_tile:
        # Small / latency-bound: no grid, every operand one VMEM-resident block.
        # (b <= batch_tile <= a few thousand rows -> a few MB of VMEM, far under the
        #  32 MiB scoped default even on v7x's 64 MiB physical VMEM.)
        return pl.pallas_call(
            kernel,
            out_shape=jax.ShapeDtypeStruct((b, h), out_dtype),
            in_specs=[pl.BlockSpec(memory_space=pltpu.MemorySpace.VMEM)] * 6,
            out_specs=pl.BlockSpec(memory_space=pltpu.MemorySpace.VMEM),
            cost_estimate=cost,
        )(state, action, ws, wa, bs, ba)

    # Batch-tiled path: b > batch_tile guarantees >= 2 grid steps, so "parallel"
    # lets v7x's two TensorCores split the batch.  Weights/biases stay VMEM-resident
    # across steps (index_map -> (0, 0)).  Ragged last block is masked by Pallas; no
    # host-side pad/slice.
    grid = (pl.cdiv(b, batch_tile),)
    return pl.pallas_call(
        kernel,
        out_shape=jax.ShapeDtypeStruct((b, h), out_dtype),
        grid=grid,
        in_specs=[
            pl.BlockSpec((batch_tile, s), lambda i: (i, 0)),
            pl.BlockSpec((batch_tile, a), lambda i: (i, 0)),
            pl.BlockSpec((s, h), lambda i: (0, 0)),
            pl.BlockSpec((a, h), lambda i: (0, 0)),
            pl.BlockSpec((1, h), lambda i: (0, 0)),
            pl.BlockSpec((1, h), lambda i: (0, 0)),
        ],
        out_specs=pl.BlockSpec((batch_tile, h), lambda i: (i, 0)),
        compiler_params=pltpu.CompilerParams(dimension_semantics=("parallel",)),
        cost_estimate=cost,
    )(state, action, ws, wa, bs, ba)


def _init_params(key, state_dim, action_dim, embed_dim):
    """Deterministic synthetic parameters (PyTorch-Linear-like uniform init)."""
    k1, k2, k3, k4 = jax.random.split(key, 4)
    lim_s = 1.0 / jnp.sqrt(state_dim)
    lim_a = 1.0 / jnp.sqrt(action_dim)
    ws = jax.random.uniform(k1, (state_dim, embed_dim), jnp.float32, -lim_s, lim_s)
    bs = jax.random.uniform(k2, (1, embed_dim), jnp.float32, -lim_s, lim_s)
    wa = jax.random.uniform(k3, (action_dim, embed_dim), jnp.float32, -lim_a, lim_a)
    ba = jax.random.uniform(k4, (1, embed_dim), jnp.float32, -lim_a, lim_a)
    return ws, bs, wa, ba


def _reference_forward(state, action, ws, bs, wa, ba):
    state_embed = jnp.tanh(state @ ws + bs)
    action_embed = jnp.tanh(action @ wa + ba)
    return state_embed + action_embed


if __name__ == "__main__":
    # Shapes consistent with the module: batch=8, state_dim=32, action_dim=16,
    # hidden_dim_obs = hidden_dim_act = embed_dim = 128.
    B, STATE_DIM, ACTION_DIM, EMBED_DIM = 8, 32, 16, 128

    key = jax.random.PRNGKey(0)
    k_state, k_action, k_params, k_big = jax.random.split(key, 4)

    state = jax.random.normal(k_state, (B, STATE_DIM), jnp.float32)
    action = jax.random.normal(k_action, (B, ACTION_DIM), jnp.float32)
    ws_f32, bs, wa_f32, ba = _init_params(k_params, STATE_DIM, ACTION_DIM, EMBED_DIM)

    # Pre-cast weights once (hoisted out of the hot path) and reuse across calls.
    ws, bs, wa, ba = prepare_params(ws_f32, bs, wa_f32, ba)

    # Small-batch (gridless, latency-bound) path.
    out = jax.block_until_ready(
        deep_map_learner_complex_forward(state, action, ws, bs, wa, ba))
    ref = _reference_forward(state, action, ws_f32, bs, wa_f32, ba)
    assert out.shape == (B, EMBED_DIM)
    assert jnp.allclose(out, ref, rtol=4e-2, atol=4e-2), "small-batch mismatch vs JAX reference"

    # Batch-tiled "parallel" path with a ragged last block: 4100 rows, tile 2048
    # -> grid of 3 steps (>= 2 so both v7x TensorCores get work), last block masked.
    BIG_B = 4100
    kb1, kb2 = jax.random.split(k_big)
    state_b = jax.random.normal(kb1, (BIG_B, STATE_DIM), jnp.float32)
    action_b = jax.random.normal(kb2, (BIG_B, ACTION_DIM), jnp.float32)
    out_b = jax.block_until_ready(
        deep_map_learner_complex_forward(state_b, action_b, ws, bs, wa, ba,
                                         batch_tile=2048))
    ref_b = _reference_forward(state_b, action_b, ws_f32, bs, wa_f32, ba)
    assert out_b.shape == (BIG_B, EMBED_DIM)
    assert jnp.allclose(out_b, ref_b, rtol=4e-2, atol=4e-2), "batched mismatch vs JAX reference"

    print("KERNEL_OK")
</pallas_src>

<mosaic_0001>
module attributes {stable_mosaic.version = 11 : i64} {
  func.func @_fused_embed_kernel(%arg0: memref<8x32xf32, #tpu.memory_space<vmem>>, %arg1: memref<8x16xf32, #tpu.memory_space<vmem>>, %arg2: memref<32x128xbf16, #tpu.memory_space<vmem>>, %arg3: memref<16x128xbf16, #tpu.memory_space<vmem>>, %arg4: memref<1x128xf32, #tpu.memory_space<vmem>>, %arg5: memref<1x128xf32, #tpu.memory_space<vmem>>, %arg6: memref<8x128xf32, #tpu.memory_space<vmem>>) attributes {dimension_semantics = [], scalar_prefetch = 0 : i64, scratch_operands = 0 : i64, tpu.core_type = #tpu.core_type<tc>} {
    %c0 = arith.constant 0 : index
    %c0_0 = arith.constant 0 : index
    %0 = vector.load %arg0[%c0, %c0_0] : memref<8x32xf32, #tpu.memory_space<vmem>>, vector<8x32xf32>
    %1 = arith.truncf %0 : vector<8x32xf32> to vector<8x32xbf16>
    %c0_1 = arith.constant 0 : index
    %c0_2 = arith.constant 0 : index
    %2 = vector.load %arg1[%c0_1, %c0_2] : memref<8x16xf32, #tpu.memory_space<vmem>>, vector<8x16xf32>
    %3 = arith.truncf %2 : vector<8x16xf32> to vector<8x16xbf16>
    %c0_3 = arith.constant 0 : index
    %c0_4 = arith.constant 0 : index
    %4 = vector.load %arg2[%c0_3, %c0_4] : memref<32x128xbf16, #tpu.memory_space<vmem>>, vector<32x128xbf16>
    %c0_5 = arith.constant 0 : index
    %c0_6 = arith.constant 0 : index
    %5 = vector.load %arg3[%c0_5, %c0_6] : memref<16x128xbf16, #tpu.memory_space<vmem>>, vector<16x128xbf16>
    %cst = arith.constant dense<0.000000e+00> : vector<8x128xf32>
    %6 = tpu.matmul %1, %4, %cst {dimension_numbers = #tpu.dot_dimension_numbers<[1], [0], [0], [1], [0, 0, 1, 1], [], []>} : vector<8x32xbf16>, vector<32x128xbf16>, vector<8x128xf32> -> vector<8x128xf32>
    %cst_7 = arith.constant dense<0.000000e+00> : vector<8x128xf32>
    %7 = tpu.matmul %3, %5, %cst_7 {dimension_numbers = #tpu.dot_dimension_numbers<[1], [0], [0], [1], [0, 0, 1, 1], [], []>} : vector<8x16xbf16>, vector<16x128xbf16>, vector<8x128xf32> -> vector<8x128xf32>
    %8 = arith.truncf %6 : vector<8x128xf32> to vector<8x128xbf16>
    %c0_8 = arith.constant 0 : index
    %c0_9 = arith.constant 0 : index
    %9 = vector.load %arg4[%c0_8, %c0_9] : memref<1x128xf32, #tpu.memory_space<vmem>>, vector<1x128xf32>
    %10 = arith.truncf %9 : vector<1x128xf32> to vector<1x128xbf16>
    %11 = vector.broadcast %10 : vector<1x128xbf16> to vector<8x128xbf16>
    %12 = arith.addf %8, %11 : vector<8x128xbf16>
    %13 = math.tanh %12 : vector<8x128xbf16>
    %14 = arith.truncf %7 : vector<8x128xf32> to vector<8x128xbf16>
    %c0_10 = arith.constant 0 : index
    %c0_11 = arith.constant 0 : index
    %15 = vector.load %arg5[%c0_10, %c0_11] : memref<1x128xf32, #tpu.memory_space<vmem>>, vector<1x128xf32>
    %16 = arith.truncf %15 : vector<1x128xf32> to vector<1x128xbf16>
    %17 = vector.broadcast %16 : vector<1x128xbf16> to vector<8x128xbf16>
    %18 = arith.addf %14, %17 : vector<8x128xbf16>
    %19 = math.tanh %18 : vector<8x128xbf16>
    %20 = arith.addf %13, %19 : vector<8x128xbf16>
    %21 = arith.extf %20 : vector<8x128xbf16> to vector<8x128xf32>
    %c0_12 = arith.constant 0 : index
    %c0_13 = arith.constant 0 : index
    %22 = vector.load %arg6[%c0_12, %c0_13] : memref<8x128xf32, #tpu.memory_space<vmem>>, vector<8x128xf32>
    tpu.vector_store %arg6[%c0_12, %c0_13], %21 {strides = array<i32>} : memref<8x128xf32, #tpu.memory_space<vmem>>, vector<8x128xf32>,
    return
  }
}

</mosaic_0001>

<llo_original>
// kernel: tpu_custom_call.1
$region0: #{tpu_custom_call.1}
  #allocation0 [shape = 'u32[]', space=smem, size = 0x4, offset = 0x4, fixed_abs, tag = 'smem constant byte address 0x4 - core index']
  #allocation1 [shape = 'u32[144,128]{1,0:T(1,128)}', space=vmem, size = 0x12000, scoped, tag = 'internal scratch']
  %s0 = inlined_call_operand.hbm [shape: f32[8,32], index: 0, kind: input, shape index: {}]
  %s1 = inlined_call_operand.hbm [shape: f32[8,16], index: 1, kind: input, shape index: {}]
  %s2 = inlined_call_operand.hbm [shape: bf16[32,128], index: 2, kind: input, shape index: {}]
  %s3 = inlined_call_operand.hbm [shape: bf16[16,128], index: 3, kind: input, shape index: {}]
  %s4 = inlined_call_operand.vmem [shape: f32[1,128], index: 4, kind: input, shape index: {}]
  %s5 = inlined_call_operand.vmem [shape: f32[1,128], index: 5, kind: input, shape index: {}]
  %s6 = inlined_call_operand.hbm [shape: f32[8,128], index: 6, kind: output, shape index: {}]
  %s7 = sld [smem:[#allocation0]]
  $region50: #{tpu_custom_call.1} parent=0
    _
  %s9 = ssub.s32 1, %s7
  %s10 = scalar_select 0, %s9, %s7
  $region1: #{tpu_custom_call.1} parent=0
    #allocation2 [shape = 'u8[4096]{0}', space=vmem, size = 0x1000, scoped, tag = 'input window, operand 0, single buffered']
    #allocation3 [shape = 's32[1]{0}', space=sflag, size = 0x4, scoped, tag = 'scoped memory for tpu_custom_call.1']
    #allocation4 [shape = 's32[1]{0}', space=sflag, size = 0x4, scoped, tag = 'scoped memory for tpu_custom_call.1']
    #allocation5 [shape = 'u8[4096]{0}', space=vmem, size = 0x1000, scoped, tag = 'input window, operand 1, single buffered']
    #allocation6 [shape = 's32[1]{0}', space=sflag, size = 0x4, scoped, tag = 'scoped memory for tpu_custom_call.1']
    #allocation7 [shape = 'u8[8192]{0}', space=vmem, size = 0x2000, scoped, tag = 'input window, operand 2, single buffered']
    #allocation8 [shape = 'u8[4096]{0}', space=vmem, size = 0x1000, scoped, tag = 'input window, operand 3, single buffered']
    #allocation9 [shape = 's32[1]{0}', space=sflag, size = 0x4, scoped, tag = 'scoped memory for tpu_custom_call.1']
    #allocation10 [shape = 'u8[4096]{0}', space=vmem, size = 0x1000, scoped, tag = 'output window, operand 0, single buffered']
    %11 = vsyncpa [#allocation3], 0
    %12 = vsyncpa [#allocation6], 0
    %13 = vsyncpa [#allocation9], 0
    %14 = vsyncpa [#allocation4], 0
    // Predicated region
    $region2: #{tpu_custom_call.1} parent=1 // pred_check
      _
    $region3: #{tpu_custom_call.1} parent=1 // pred_check_branch
      %16 = sbr.rel (0) target = $region5
    $region4: #{tpu_custom_call.1} parent=1 // pred_region
      %s18 = ssub.s32 128, 128
      %19 = vsyncadd [#allocation3], %s18
      %s21 = sshll.u32 [#allocation2], 4
      %s22 = int_to_ptr.vmem [resolvable:$true] %s21
      %24 = dma.hbm_to_vmem [thread:$0]  %s0, 128, %s22, [#allocation3]
    $region5: #{tpu_custom_call.1} parent=1 // pred_fallthru
      _
    // Predicated region
    $region6: #{tpu_custom_call.1} parent=1 // pred_check
      _
    $region7: #{tpu_custom_call.1} parent=1 // pred_check_branch
      %26 = sbr.rel (0) target = $region9
    $region8: #{tpu_custom_call.1} parent=1 // pred_region
      %s28 = ssub.s32 128, 128
      %29 = vsyncadd [#allocation6], %s28
      %s31 = sshll.u32 [#allocation5], 4
      %s32 = int_to_ptr.vmem [resolvable:$true] %s31
      %34 = dma.hbm_to_vmem [thread:$0]  %s1, 128, %s32, [#allocation6]
    $region9: #{tpu_custom_call.1} parent=1 // pred_fallthru
      _
    // Predicated region
    $region10: #{tpu_custom_call.1} parent=1 // pred_check
      _
    $region11: #{tpu_custom_call.1} parent=1 // pred_check_branch
      %36 = sbr.rel (0) target = $region13
    $region12: #{tpu_custom_call.1} parent=1 // pred_region
      %s38 = ssub.s32 256, 256
      %39 = vsyncadd [#allocation6], %s38
      %s40 = sshll.u32 [#allocation7], 4
      %s41 = int_to_ptr.vmem [resolvable:$true] %s40
      %46 = dma.hbm_to_vmem [thread:$0]  %s2, 256, %s41, [#allocation6], 64, 64, 4
    $region13: #{tpu_custom_call.1} parent=1 // pred_fallthru
      _
    // Predicated region
    $region14: #{tpu_custom_call.1} parent=1 // pred_check
      _
    $region15: #{tpu_custom_call.1} parent=1 // pred_check_branch
      %48 = sbr.rel (0) target = $region17
    $region16: #{tpu_custom_call.1} parent=1 // pred_region
      %s50 = ssub.s32 128, 128
      %51 = vsyncadd [#allocation9], %s50
      %s52 = sshll.u32 [#allocation8], 4
      %s53 = int_to_ptr.vmem [resolvable:$true] %s52
      %58 = dma.hbm_to_vmem [thread:$0]  %s3, 128, %s53, [#allocation9], 64, 64, 4
    $region17: #{tpu_custom_call.1} parent=1 // pred_fallthru
      _
    // Predicated region
    $region18: #{tpu_custom_call.1} parent=1 // pred_check
      _
    $region19: #{tpu_custom_call.1} parent=1 // pred_check_branch
      %60 = sbr.rel (0) target = $region21
    $region20: #{tpu_custom_call.1} parent=1 // pred_region
      _
    $region21: #{tpu_custom_call.1} parent=1 // pred_fallthru
      _
    // Predicated region
    $region22: #{tpu_custom_call.1} parent=1 // pred_check
      _
    $region23: #{tpu_custom_call.1} parent=1 // pred_check_branch
      %62 = sbr.rel (0) target = $region25
    $region24: #{tpu_custom_call.1} parent=1 // pred_region
      _
    $region25: #{tpu_custom_call.1} parent=1 // pred_fallthru
      _
    // Predicated region
    $region26: #{tpu_custom_call.1} parent=1 // pred_check
      _
    $region27: #{tpu_custom_call.1} parent=1 // pred_check_branch
      %64 = sbr.rel (0) target = $region29
    $region28: #{tpu_custom_call.1} parent=1 // pred_region
      %65 = dma.done [#allocation3], 128
    $region29: #{tpu_custom_call.1} parent=1 // pred_fallthru
      _
    // Predicated region
    $region30: #{tpu_custom_call.1} parent=1 // pred_check
      _
    $region31: #{tpu_custom_call.1} parent=1 // pred_check_branch
      %67 = sbr.rel (0) target = $region33
    $region32: #{tpu_custom_call.1} parent=1 // pred_region
      %68 = dma.done [#allocation6], 128
    $region33: #{tpu_custom_call.1} parent=1 // pred_fallthru
      _
    // Predicated region
    $region34: #{tpu_custom_call.1} parent=1 // pred_check
      _
    $region35: #{tpu_custom_call.1} parent=1 // pred_check_branch
      %70 = sbr.rel (0) target = $region37
    $region36: #{tpu_custom_call.1} parent=1 // pred_region
      %71 = dma.done [#allocation6], 256
    $region37: #{tpu_custom_call.1} parent=1 // pred_fallthru
      _
    // Predicated region
    $region38: #{tpu_custom_call.1} parent=1 // pred_check
      _
    $region39: #{tpu_custom_call.1} parent=1 // pred_check_branch
      %73 = sbr.rel (0) target = $region41
    $region40: #{tpu_custom_call.1} parent=1 // pred_region
      %74 = dma.done [#allocation9], 128
    $region41: #{tpu_custom_call.1} parent=1 // pred_fallthru
      _
    %v76 = vld [vmem:[#allocation2] sm:$0xff]
    %v77 = vpack.c.bf16 %v76, %v76
    %v78 = vld [vmem:[#allocation5] sm:$0xff]
    %v79 = vpack.c.bf16 %v78, %v78
    %v80 = vld [vmem:[#allocation7] sm:$0xf]
    %v81 = vld [vmem:[#allocation7 + $0x4] sm:$0xf]
    %v82 = vld [vmem:[#allocation7 + $0x8] sm:$0xf]
    %v83 = vld [vmem:[#allocation7 + $0xc] sm:$0xf]
    %v84 = vld [vmem:[#allocation8] sm:$0xf]
    %v85 = vld [vmem:[#allocation8 + $0x4] sm:$0xf]
    %v90 = vunpack.c.l.b16 %v80
    %v91 = vunpack.c.l.b16 %v81
    %v92 = vunpack.c.l.b16 %v82
    %v93 = vunpack.c.l.b16 %v83
    %v94 = vpack.c.b16 %v91, %v90
    %v95 = vpack.c.b16 %v93, %v92
    %vm98 = vcmask 261120
    %v100 = vsel %vm98, %v77, 0
    %102 = vmatprep.subr.bf16.mxu0 0
    %103 = vmatpush1.bf16.msra.mxu0 0
    %104 = vmatprep.subr.bf16.mxu0 0
    %105 = vmatpush1.bf16.msra.mxu0 0
    %106 = vmatprep.subr.bf16.mxu0 0
    %107 = vmatpush1.bf16.msra.mxu0 0
    %108 = vmatprep.subr.bf16.mxu0 0
    %109 = vmatpush1.bf16.msra.mxu0 0
    %110 = vmatprep.subr.bf16.mxu0 0
    %111 = vmatpush1.bf16.msra.mxu0 0
    %112 = vmatprep.subr.bf16.mxu0 0
    %113 = vmatpush1.bf16.msra.mxu0 0
    %114 = vmatprep.subr.bf16.mxu0 0
    %115 = vmatpush1.bf16.msra.mxu0 %v95
    %116 = vmatprep.subr.bf16.mxu0 0
    %117 = vmatpush1.bf16.msra.mxu0 %v94
    %118 = vmatprep.subr.bf16.mxu0 0
    %119 = vmatpush2.bf16.msra.mxu0 0
    %120 = vmatprep.subr.bf16.mxu0 0
    %121 = vmatpush2.bf16.msra.mxu0 0
    %122 = vmatprep.subr.bf16.mxu0 0
    %123 = vmatpush2.bf16.msra.mxu0 0
    %124 = vmatprep.subr.bf16.mxu0 0
    %125 = vmatpush2.bf16.msra.mxu0 0
    %126 = vmatprep.subr.bf16.mxu0 0
    %127 = vmatpush2.bf16.msra.mxu0 0
    %128 = vmatprep.subr.bf16.mxu0 0
    %129 = vmatpush2.bf16.msra.mxu0 0
    %130 = vmatprep.subr.bf16.mxu0 0
    %131 = vmatpush2.bf16.msra.mxu0 0
    %132 = vmatprep.subr.bf16.mxu0 0
    %133 = vmatpush2.bf16.msra.mxu0 0
    %134 = vmatprep.mubr.bf16.mxu0 0
    %135 = vmatmul.mubr.bf16.gmra.mxu0 %v100
    %v136 = vpop.f32.mrf.mxu0
    %v137 = vadd.f32 0.0, %v136
    %v138 = vpop.f32.mrf.mxu0
    %v139 = vpop.f32.mrf.mxu0
    %v140 = vpop.f32.mrf.mxu0
    %141 = vdwg.mxu0
    %v144 = vunpack.c.l.b16 %v84
    %v145 = vunpack.c.l.b16 %v85
    %v146 = vpack.c.b16 %v145, %v144
    %vm148 = vcmask 130048
    %v150 = vsel %vm148, %v79, 0
    %152 = vmatprep.subr.bf16.mxu0 0
    %153 = vmatpush1.bf16.msra.mxu0 0
    %154 = vmatprep.subr.bf16.mxu0 0
    %155 = vmatpush1.bf16.msra.mxu0 0
    %156 = vmatprep.subr.bf16.mxu0 0
    %157 = vmatpush1.bf16.msra.mxu0 0
    %158 = vmatprep.subr.bf16.mxu0 0
    %159 = vmatpush1.bf16.msra.mxu0 0
    %160 = vmatprep.subr.bf16.mxu0 0
    %161 = vmatpush1.bf16.msra.mxu0 0
    %162 = vmatprep.subr.bf16.mxu0 0
    %163 = vmatpush1.bf16.msra.mxu0 0
    %164 = vmatprep.subr.bf16.mxu0 0
    %165 = vmatpush1.bf16.msra.mxu0 0
    %166 = vmatprep.subr.bf16.mxu0 0
    %167 = vmatpush1.bf16.msra.mxu0 %v146
    %168 = vmatprep.subr.bf16.mxu0 0
    %169 = vmatpush2.bf16.msra.mxu0 0
    %170 = vmatprep.subr.bf16.mxu0 0
    %171 = vmatpush2.bf16.msra.mxu0 0
    %172 = vmatprep.subr.bf16.mxu0 0
    %173 = vmatpush2.bf16.msra.mxu0 0
    %174 = vmatprep.subr.bf16.mxu0 0
    %175 = vmatpush2.bf16.msra.mxu0 0
    %176 = vmatprep.subr.bf16.mxu0 0
    %177 = vmatpush2.bf16.msra.mxu0 0
    %178 = vmatprep.subr.bf16.mxu0 0
    %179 = vmatpush2.bf16.msra.mxu0 0
    %180 = vmatprep.subr.bf16.mxu0 0
    %181 = vmatpush2.bf16.msra.mxu0 0
    %182 = vmatprep.subr.bf16.mxu0 0
    %183 = vmatpush2.bf16.msra.mxu0 0
    %184 = vmatprep.mubr.bf16.mxu0 0
    %185 = vmatmul.mubr.bf16.gmra.mxu0 %v150
    %v186 = vpop.f32.mrf.mxu0
    %v187 = vadd.f32 0.0, %v186
    %v188 = vpop.f32.mrf.mxu0
    %v189 = vpop.f32.mrf.mxu0
    %v190 = vpop.f32.mrf.mxu0
    %191 = vdwg.mxu0
    %v192 = vpack.c.bf16 %v137, %v137
    %v193 = vld [vmem:[%s4] sm:$0x1]
    %v194 = vpack.c.bf16 %v193, %v193
    %v196 = vpack.i.b16 %v194, %v194
    %v198 = vlaneseq
    %v199 = vshrl.u32 %v198, 7
    %v200 = vsub.s32 0, %v199
    %v201 = vrot.slane %v196, %v200
    %v202 = vadd.bf16 %v192, %v201
    %v203 = vtanh.bf16.pop %v202
    %v204 = vpack.c.bf16 %v187, %v187
    %v205 = vld [vmem:[%s5] sm:$0x1]
    %v206 = vpack.c.bf16 %v205, %v205
    %v208 = vpack.i.b16 %v206, %v206
    %v210 = vlaneseq
    %v211 = vshrl.u32 %v210, 7
    %v212 = vsub.s32 0, %v211
    %v213 = vrot.slane %v208, %v212
    %v214 = vadd.bf16 %v204, %v213
    %v215 = vtanh.bf16.pop %v214
    %v216 = vadd.bf16 %v203, %v215
    %v217 = vunpack.c.l.bf16 %v216
    %218 = vst [vmem:[#allocation10] sm:$0xff] %v217
    // Predicated region
    $region42: #{tpu_custom_call.1} parent=1 // pred_check
      _
    $region43: #{tpu_custom_call.1} parent=1 // pred_check_branch
      %220 = sbr.rel (0) target = $region45
    $region44: #{tpu_custom_call.1} parent=1 // pred_region
      %s222 = ssub.s32 128, 128
      %223 = vsyncadd [#allocation4], %s222
      %s225 = sshll.u32 [#allocation10], 4
      %s226 = int_to_ptr.vmem [resolvable:$true] %s225
      %228 = dma.vmem_to_hbm [thread:$0]  %s226, 128, %s6, [#allocation4]
    $region45: #{tpu_custom_call.1} parent=1 // pred_fallthru
      _
    // Predicated region
    $region46: #{tpu_custom_call.1} parent=1 // pred_check
      _
    $region47: #{tpu_custom_call.1} parent=1 // pred_check_branch
      %230 = sbr.rel (0) target = $region49
    $region48: #{tpu_custom_call.1} parent=1 // pred_region
      %231 = dma.done [#allocation4], 128
    $region49: #{tpu_custom_call.1} parent=1 // pred_fallthru
      _
    %232 = vsyncpa [#allocation3], 1
    %233 = vsyncpa [#allocation6], 1
    %234 = vsyncpa [#allocation9], 1
    %235 = vsyncpa [#allocation4], 1

</llo_original>
